<compile_context>
chip_gen: v5e
topology: v5e:2x2
jax: 0.10.0
libtpu: 0.0.40
codegen_flags: <defaults>
</compile_context>

<pallas_src>
import numpy as np

import jax
import jax.numpy as jnp
from jax.experimental import pallas as pl
from jax.experimental.pallas import tpu as pltpu


# --------------------------------------------------------------------------- #
# Kernel
# --------------------------------------------------------------------------- #
def _softplus(x):
    # Matches torch.nn.Softplus (beta=1, threshold=20): linear above threshold.
    # exp/log1p run on the EUP slot; the select stays on the VPU.
    return jnp.where(x > 20.0, x, jnp.log1p(jnp.exp(jnp.minimum(x, 20.0))))


def mvn_encoder_kernel(x_ref, w1_ref, b1_ref, wl_ref, bl_ref, ws_ref, bs_ref,
                       loc_ref, sc_ref):
    """fc1 + softplus, then loc / scale heads; one batch tile per grid step."""
    x = x_ref[...]                                                    # (TB, item)
    h = _softplus(jnp.dot(x, w1_ref[...],
                          preferred_element_type=jnp.float32) + b1_ref[...])
    loc_ref[...] = (jnp.dot(h, wl_ref[...],
                            preferred_element_type=jnp.float32)
                    + bl_ref[...]).astype(loc_ref.dtype)              # (TB, x_dim)
    sc_ref[...] = (jnp.dot(h, ws_ref[...],
                           preferred_element_type=jnp.float32)
                   + bs_ref[...]).astype(sc_ref.dtype)                # (TB, n_sc)


# --------------------------------------------------------------------------- #
# Host-side helpers
# --------------------------------------------------------------------------- #
def _lane_pad(n):
    return ((max(int(n), 1) + 127) // 128) * 128


def _sublane_pad(n):
    return ((max(int(n), 1) + 7) // 8) * 8


def _pick_batch_tile(B, row_bytes, *, max_tile=2048, min_steps=4,
                     vmem_budget=8 << 20):
    """Large tiles amortize the ~0.35us/step grid overhead; min_steps keeps
    several steps (DMA/compute overlap + v7x megacore split) when B is large
    enough; the VMEM clamp keeps double-buffered tiles well inside every
    generation's default scoped VMEM (incl. v7x's 64 MiB physical)."""
    tb = min(max_tile, max(8, (B + min_steps - 1) // min_steps))
    tb = min(tb, max(8, vmem_budget // max(row_bytes, 1)))
    return int(((tb + 7) // 8) * 8)     # sublane-aligned batch tile


def _estimate_vmem_bytes(tb, item_size, hidden_dim, x_dim, n_sc):
    """Worst case: everything f32 and double-buffered, with (8,128) padding."""
    tiles = tb * (_lane_pad(item_size) + _lane_pad(x_dim) + _lane_pad(n_sc))
    consts = (_sublane_pad(item_size) * _lane_pad(hidden_dim)
              + _sublane_pad(1) * _lane_pad(hidden_dim)
              + _sublane_pad(hidden_dim) * _lane_pad(x_dim)
              + _sublane_pad(1) * _lane_pad(x_dim)
              + _sublane_pad(hidden_dim) * _lane_pad(n_sc)
              + _sublane_pad(1) * _lane_pad(n_sc))
    return 2 * 4 * (tiles + consts)


def _scoped_and_physical_vmem():
    """(default scoped VMEM, physical VMEM) for the current chip, conservative
    fallback (v5e numbers) if the query is unavailable."""
    scoped, phys = 16 << 20, 128 << 20
    try:
        info = pltpu.get_tpu_info()
        phys = int(getattr(info, "vmem_capacity_bytes", phys))
        ver = str(getattr(info, "chip_version", "")).lower()
        if "5" not in ver:          # v6e / v7x default scoped VMEM is 32 MiB
            scoped = 32 << 20
    except Exception:
        pass
    return scoped, phys


def _tril_scatter_matrix(x_dim):
    """Constant 0/1 matrix mapping flat tril entries -> dense x_dim*x_dim.
    np.tril_indices is row-major, identical to torch.tril_indices ordering."""
    tril_size = x_dim * (x_dim + 1) // 2
    rows, cols = np.tril_indices(x_dim)
    s = np.zeros((tril_size, x_dim * x_dim), np.float32)
    s[np.arange(tril_size), rows * x_dim + cols] = 1.0
    return jnp.asarray(s)


# --------------------------------------------------------------------------- #
# Forward
# --------------------------------------------------------------------------- #
def mvn_encoder_forward(x, params, *, x_dim, batch_tile=None):
    w1, b1, w21, b21, w22, b22 = params
    B, item_size = x.shape
    hidden_dim = w1.shape[1]
    tril_size = w22.shape[1]
    dense_cols = x_dim * x_dim

    # --- Fold the tril scatter into fc22 (exact: S is a 0/1 selector), gated
    #     so a large x_dim doesn't blow the output width up quadratically.
    scatter = _tril_scatter_matrix(x_dim)                  # (tril, x_dim^2)
    fold = dense_cols <= max(128, _lane_pad(tril_size))
    if fold:
        ws = w22 @ scatter                                 # (hidden, x_dim^2)
        bs = b22 @ scatter
    else:
        ws, bs = w22, b22                                  # (hidden, tril)
    n_sc = ws.shape[1]

    # --- Batch tiling + padding (no divisibility requirement on B).
    row_bytes = 8 * (_lane_pad(item_size) + _lane_pad(x_dim) + _lane_pad(n_sc))
    tb = _pick_batch_tile(B, row_bytes) if batch_tile is None else batch_tile
    steps = (B + tb - 1) // tb
    if steps > 1 and steps % 2:
        steps += 1                     # even grid so v7x's 2 TCs split evenly
    B_pad = steps * tb
    x_in = jnp.pad(x, ((0, B_pad - B), (0, 0))) if B_pad != B else x

    # --- Generation-aware VMEM limit: only raise past the per-chip default,
    #     keep >=16 MiB of headroom below physical (v7x has only 64 MiB).
    est = _estimate_vmem_bytes(tb, item_size, hidden_dim, x_dim, n_sc)
    scoped, phys = _scoped_and_physical_vmem()
    vmem_limit = None
    if est > scoped:
        vmem_limit = int(min(int(est * 1.5), phys - (16 << 20)))

    # Weights/biases are grid-invariant (index_map always (0,0)); single-
    # buffering them (pl.Buffered(1)) was considered but skipped — the saving
    # is a few KiB at hidden_dim=32 and not worth the extra pipeline mode.
    const = lambda shape: pl.BlockSpec(shape, lambda i: (0, 0))

    loc, sc = pl.pallas_call(
        mvn_encoder_kernel,
        out_shape=(jax.ShapeDtypeStruct((B_pad, x_dim), jnp.float32),
                   jax.ShapeDtypeStruct((B_pad, n_sc), jnp.float32)),
        grid_spec=pltpu.PrefetchScalarGridSpec(
            num_scalar_prefetch=0,
            grid=(steps,),
            in_specs=[
                pl.BlockSpec((tb, item_size), lambda i: (i, 0)),   # x tile
                const((item_size, hidden_dim)),                    # W1^T
                const((1, hidden_dim)),                            # b1
                const((hidden_dim, x_dim)),                        # W21^T
                const((1, x_dim)),                                 # b21
                const((hidden_dim, n_sc)),                         # W22d^T (or W22^T)
                const((1, n_sc)),                                  # b22d   (or b22)
            ],
            out_specs=[pl.BlockSpec((tb, x_dim), lambda i: (i, 0)),
                       pl.BlockSpec((tb, n_sc), lambda i: (i, 0))],
        ),
        compiler_params=pltpu.CompilerParams(
            dimension_semantics=("parallel",),
            vmem_limit_bytes=vmem_limit),
    )(x_in, w1, b1, w21, b21, ws, bs)

    loc = loc[:B]
    sc = sc[:B]
    if fold:
        # Trailing-dim reshape only — no extra HBM pass.
        x_scale = sc.reshape(B, x_dim, x_dim)
    else:
        # Fallback for very large x_dim: tril output + host-side dense scatter.
        x_scale = (sc @ scatter).reshape(B, x_dim, x_dim)
    return loc, x_scale


# --------------------------------------------------------------------------- #
# Params / reference
# --------------------------------------------------------------------------- #
def init_params(key, item_size, x_dim, hidden_dim):
    """nn.Linear-style init: U(-1/sqrt(fan_in), 1/sqrt(fan_in)).
    Weights stored transposed: (in_features, out_features)."""
    tril_size = x_dim * (x_dim + 1) // 2
    ks = jax.random.split(key, 6)

    def lin(kw, kb, fan_in, fan_out):
        bound = 1.0 / (fan_in ** 0.5)
        w = jax.random.uniform(kw, (fan_in, fan_out), jnp.float32, -bound, bound)
        b = jax.random.uniform(kb, (1, fan_out), jnp.float32, -bound, bound)
        return w, b

    w1, b1 = lin(ks[0], ks[1], item_size, hidden_dim)
    w21, b21 = lin(ks[2], ks[3], hidden_dim, x_dim)
    w22, b22 = lin(ks[4], ks[5], hidden_dim, tril_size)
    return (w1, b1, w21, b21, w22, b22)


def reference_forward(x, params, x_dim):
    """Pure-JAX reference for correctness checking."""
    w1, b1, w21, b21, w22, b22 = params
    h = jax.nn.softplus(x @ w1 + b1)
    loc = h @ w21 + b21
    sc = h @ w22 + b22
    rows, cols = jnp.tril_indices(x_dim)
    scale = jnp.zeros(sc.shape[:-1] + (x_dim, x_dim), jnp.float32)
    scale = scale.at[..., rows, cols].set(sc)
    return loc, scale


# --------------------------------------------------------------------------- #
# Demo / self-test
# --------------------------------------------------------------------------- #
if __name__ == "__main__":
    # Small shapes consistent with the module: item_size=16, x_dim=4,
    # hidden_dim=32 -> tril flat size = 10.  batch=256 gives a 4-step grid
    # (tile 64) -> real pipelining and an even split across v7x's 2 TCs.
    batch, item_size, x_dim, hidden_dim = 256, 16, 4, 32
    tril_size = x_dim * (x_dim + 1) // 2

    # Unit test: scatter-matrix ordering matches torch.tril_indices (row-major).
    S = np.asarray(_tril_scatter_matrix(x_dim))
    t = np.arange(1, tril_size + 1, dtype=np.float32)
    dense = (t @ S).reshape(x_dim, x_dim)
    r, c = np.tril_indices(x_dim)
    assert (dense[r, c] == t).all() and (np.triu(dense, 1) == 0).all()

    key = jax.random.PRNGKey(0)
    k_params, k_x = jax.random.split(key)
    params = init_params(k_params, item_size, x_dim, hidden_dim)
    x = jax.random.normal(k_x, (batch, item_size), jnp.float32)

    ref_loc, ref_scale = reference_forward(x, params, x_dim)

    # --- main path: fold enabled, f32, multi-step grid -----------------------
    loc, scale = mvn_encoder_forward(x, params, x_dim=x_dim)
    jax.block_until_ready((loc, scale))
    assert loc.shape == (batch, x_dim)
    assert scale.shape == (batch, x_dim, x_dim)
    assert jnp.allclose(loc, ref_loc, atol=1e-5, rtol=1e-5)
    assert jnp.allclose(scale, ref_scale, atol=1e-5, rtol=1e-5)
    assert jnp.allclose(scale, jnp.tril(scale))   # strictly lower-triangular

    # --- awkward batch size: exercises the pad-to-tile / slice-back path -----
    xb = x[:200]
    loc2, scale2 = mvn_encoder_forward(xb, params, x_dim=x_dim)
    jax.block_until_ready((loc2, scale2))
    assert loc2.shape == (200, x_dim) and scale2.shape == (200, x_dim, x_dim)
    assert jnp.allclose(loc2, ref_loc[:200], atol=1e-5, rtol=1e-5)
    assert jnp.allclose(scale2, ref_scale[:200], atol=1e-5, rtol=1e-5)

    print("KERNEL_OK")
</pallas_src>

<mosaic_0001>
module attributes {stable_mosaic.version = 11 : i64} {
  func.func @mvn_encoder_kernel(%arg0: i32, %arg1: memref<64x16xf32, #tpu.memory_space<vmem>>, %arg2: memref<16x32xf32, #tpu.memory_space<vmem>>, %arg3: memref<1x32xf32, #tpu.memory_space<vmem>>, %arg4: memref<32x4xf32, #tpu.memory_space<vmem>>, %arg5: memref<1x4xf32, #tpu.memory_space<vmem>>, %arg6: memref<32x16xf32, #tpu.memory_space<vmem>>, %arg7: memref<1x16xf32, #tpu.memory_space<vmem>>, %arg8: memref<64x4xf32, #tpu.memory_space<vmem>>, %arg9: memref<64x16xf32, #tpu.memory_space<vmem>>) attributes {dimension_semantics = [#tpu.dimension_semantics<parallel>], iteration_bounds = array<i64: 4>, scalar_prefetch = 0 : i64, scratch_operands = 0 : i64, tpu.core_type = #tpu.core_type<tc>, window_params = [{transform_indices = @transform_0, window_bounds = array<i64: 64, 16>}, {pipeline_mode = #tpu.pipeline_mode<synchronous>, transform_indices = @transform_1, window_bounds = array<i64: 16, 32>}, {pipeline_mode = #tpu.pipeline_mode<synchronous>, transform_indices = @transform_2, window_bounds = array<i64: 1, 32>}, {pipeline_mode = #tpu.pipeline_mode<synchronous>, transform_indices = @transform_3, window_bounds = array<i64: 32, 4>}, {pipeline_mode = #tpu.pipeline_mode<synchronous>, transform_indices = @transform_4, window_bounds = array<i64: 1, 4>}, {pipeline_mode = #tpu.pipeline_mode<synchronous>, transform_indices = @transform_5, window_bounds = array<i64: 32, 16>}, {pipeline_mode = #tpu.pipeline_mode<synchronous>, transform_indices = @transform_6, window_bounds = array<i64: 1, 16>}, {transform_indices = @transform_7, window_bounds = array<i64: 64, 4>}, {transform_indices = @transform_8, window_bounds = array<i64: 64, 16>}]} {
    %c0 = arith.constant 0 : index
    %c0_0 = arith.constant 0 : index
    %0 = vector.load %arg1[%c0, %c0_0] : memref<64x16xf32, #tpu.memory_space<vmem>>, vector<64x16xf32>
    %c0_1 = arith.constant 0 : index
    %c0_2 = arith.constant 0 : index
    %1 = vector.load %arg2[%c0_1, %c0_2] : memref<16x32xf32, #tpu.memory_space<vmem>>, vector<16x32xf32>
    %cst = arith.constant dense<0.000000e+00> : vector<64x32xf32>
    %2 = tpu.matmul %0, %1, %cst {dimension_numbers = #tpu.dot_dimension_numbers<[1], [0], [0], [1], [0, 0, 1, 1], [], []>} : vector<64x16xf32>, vector<16x32xf32>, vector<64x32xf32> -> vector<64x32xf32>
    %c0_3 = arith.constant 0 : index
    %c0_4 = arith.constant 0 : index
    %3 = vector.load %arg3[%c0_3, %c0_4] : memref<1x32xf32, #tpu.memory_space<vmem>>, vector<1x32xf32>
    %4 = vector.broadcast %3 : vector<1x32xf32> to vector<64x32xf32>
    %5 = arith.addf %2, %4 : vector<64x32xf32>
    %cst_5 = arith.constant 2.000000e+01 : f32
    %6 = vector.broadcast %cst_5 : f32 to vector<64x32xf32>
    %7 = arith.cmpf ogt, %5, %6 : vector<64x32xf32>
    %cst_6 = arith.constant 2.000000e+01 : f32
    %8 = vector.broadcast %cst_6 : f32 to vector<64x32xf32>
    %9 = arith.minimumf %5, %8 : vector<64x32xf32>
    %10 = math.exp %9 : vector<64x32xf32>
    %11 = math.log1p %10 : vector<64x32xf32>
    %12 = arith.select %7, %5, %11 : vector<64x32xi1>, vector<64x32xf32>
    %c0_7 = arith.constant 0 : index
    %c0_8 = arith.constant 0 : index
    %13 = vector.load %arg4[%c0_7, %c0_8] : memref<32x4xf32, #tpu.memory_space<vmem>>, vector<32x4xf32>
    %cst_9 = arith.constant dense<0.000000e+00> : vector<64x4xf32>
    %14 = tpu.matmul %12, %13, %cst_9 {dimension_numbers = #tpu.dot_dimension_numbers<[1], [0], [0], [1], [0, 0, 1, 1], [], []>} : vector<64x32xf32>, vector<32x4xf32>, vector<64x4xf32> -> vector<64x4xf32>
    %c0_10 = arith.constant 0 : index
    %c0_11 = arith.constant 0 : index
    %15 = vector.load %arg5[%c0_10, %c0_11] : memref<1x4xf32, #tpu.memory_space<vmem>>, vector<1x4xf32>
    %16 = vector.broadcast %15 : vector<1x4xf32> to vector<64x4xf32>
    %17 = arith.addf %14, %16 : vector<64x4xf32>
    %c0_12 = arith.constant 0 : index
    %c0_13 = arith.constant 0 : index
    %18 = vector.load %arg8[%c0_12, %c0_13] : memref<64x4xf32, #tpu.memory_space<vmem>>, vector<64x4xf32>
    tpu.vector_store %arg8[%c0_12, %c0_13], %17 {strides = array<i32>} : memref<64x4xf32, #tpu.memory_space<vmem>>, vector<64x4xf32>,
    %c0_14 = arith.constant 0 : index
    %c0_15 = arith.constant 0 : index
    %19 = vector.load %arg6[%c0_14, %c0_15] : memref<32x16xf32, #tpu.memory_space<vmem>>, vector<32x16xf32>
    %cst_16 = arith.constant dense<0.000000e+00> : vector<64x16xf32>
    %20 = tpu.matmul %12, %19, %cst_16 {dimension_numbers = #tpu.dot_dimension_numbers<[1], [0], [0], [1], [0, 0, 1, 1], [], []>} : vector<64x32xf32>, vector<32x16xf32>, vector<64x16xf32> -> vector<64x16xf32>
    %c0_17 = arith.constant 0 : index
    %c0_18 = arith.constant 0 : index
    %21 = vector.load %arg7[%c0_17, %c0_18] : memref<1x16xf32, #tpu.memory_space<vmem>>, vector<1x16xf32>
    %22 = vector.broadcast %21 : vector<1x16xf32> to vector<64x16xf32>
    %23 = arith.addf %20, %22 : vector<64x16xf32>
    %c0_19 = arith.constant 0 : index
    %c0_20 = arith.constant 0 : index
    %24 = vector.load %arg9[%c0_19, %c0_20] : memref<64x16xf32, #tpu.memory_space<vmem>>, vector<64x16xf32>
    tpu.vector_store %arg9[%c0_19, %c0_20], %23 {strides = array<i32>} : memref<64x16xf32, #tpu.memory_space<vmem>>, vector<64x16xf32>,
    return
  }
  func.func @transform_0(%arg0: i32) -> (i32, i32) {
    %c0_i32 = arith.constant 0 : i32
    %c0_i32_0 = arith.constant 0 : i32
    return %arg0, %c0_i32 : i32, i32
  }
  func.func @transform_1(%arg0: i32) -> (i32, i32) {
    %c0_i32 = arith.constant 0 : i32
    %c0_i32_0 = arith.constant 0 : i32
    %c0_i32_1 = arith.constant 0 : i32
    return %c0_i32, %c0_i32_0 : i32, i32
  }
  func.func @transform_2(%arg0: i32) -> (i32, i32) {
    %c0_i32 = arith.constant 0 : i32
    %c0_i32_0 = arith.constant 0 : i32
    %c0_i32_1 = arith.constant 0 : i32
    return %c0_i32, %c0_i32_0 : i32, i32
  }
  func.func @transform_3(%arg0: i32) -> (i32, i32) {
    %c0_i32 = arith.constant 0 : i32
    %c0_i32_0 = arith.constant 0 : i32
    %c0_i32_1 = arith.constant 0 : i32
    return %c0_i32, %c0_i32_0 : i32, i32
  }
  func.func @transform_4(%arg0: i32) -> (i32, i32) {
    %c0_i32 = arith.constant 0 : i32
    %c0_i32_0 = arith.constant 0 : i32
    %c0_i32_1 = arith.constant 0 : i32
    return %c0_i32, %c0_i32_0 : i32, i32
  }
  func.func @transform_5(%arg0: i32) -> (i32, i32) {
    %c0_i32 = arith.constant 0 : i32
    %c0_i32_0 = arith.constant 0 : i32
    %c0_i32_1 = arith.constant 0 : i32
    return %c0_i32, %c0_i32_0 : i32, i32
  }
  func.func @transform_6(%arg0: i32) -> (i32, i32) {
    %c0_i32 = arith.constant 0 : i32
    %c0_i32_0 = arith.constant 0 : i32
    %c0_i32_1 = arith.constant 0 : i32
    return %c0_i32, %c0_i32_0 : i32, i32
  }
  func.func @transform_7(%arg0: i32) -> (i32, i32) {
    %c0_i32 = arith.constant 0 : i32
    %c0_i32_0 = arith.constant 0 : i32
    return %arg0, %c0_i32 : i32, i32
  }
  func.func @transform_8(%arg0: i32) -> (i32, i32) {
    %c0_i32 = arith.constant 0 : i32
    %c0_i32_0 = arith.constant 0 : i32
    return %arg0, %c0_i32 : i32, i32
  }
}

</mosaic_0001>

<llo_original>
// kernel: tpu_custom_call.1
$region0: #{tpu_custom_call.1}
  #allocation0 [shape = 'u32[]', space=smem, size = 0x4, offset = 0x4, fixed_abs, tag = 'smem constant byte address 0x4 - core index']
  #allocation1 [shape = 'u32[72,128]{1,0:T(1,128)}', space=vmem, size = 0x9000, scoped, tag = 'internal scratch']
  %s0 = inlined_call_operand.vmem [shape: f32[256,16], index: 0, kind: input, shape index: {}]
  %s1 = inlined_call_operand.vmem [shape: f32[16,32], index: 1, kind: input, shape index: {}]
  %s2 = inlined_call_operand.vmem [shape: f32[1,32], index: 2, kind: input, shape index: {}]
  %s3 = inlined_call_operand.vmem [shape: f32[32,4], index: 3, kind: input, shape index: {}]
  %s4 = inlined_call_operand.vmem [shape: f32[1,4], index: 4, kind: input, shape index: {}]
  %s5 = inlined_call_operand.vmem [shape: f32[32,16], index: 5, kind: input, shape index: {}]
  %s6 = inlined_call_operand.vmem [shape: f32[1,16], index: 6, kind: input, shape index: {}]
  %s7 = inlined_call_operand.vmem [shape: f32[256,4], index: 7, kind: output, shape index: {0}]
  %s8 = inlined_call_operand.vmem [shape: f32[256,16], index: 8, kind: output, shape index: {1}]
  %9 = xla_tuple %s7, %s8
  %s10 = sld [smem:[#allocation0]]
  $region69: #{tpu_custom_call.1} parent=0
    _
  %s12 = ssub.s32 1, %s10
  %s13 = scalar_select 0, %s12, %s10
  loop: start=0, step=1, limit=6
  $region2: #{tpu_custom_call.1} parent=0 // loop_pre_header
    _
  $region3: #{tpu_custom_call.1} parent=0 // loop_header
    %s15 = sphi 0, %s19
    %p16 = scmp.ge.s32.totalorder %s15, 6
    %s25 = sphi 0, %s27
    %s28 = sphi 0, %s25
    %s29 = sphi 0, %s28
    %s45 = sphi 0, %s29
    %s49 = sphi 0, %s49
    %s51 = sphi 0, %s49
    %s52 = sphi 0, %s51
    %s66 = sphi 0, %s52
    %s70 = sphi 0, %s70
    %s72 = sphi 0, %s70
    %s73 = sphi 0, %s72
    %s87 = sphi 0, %s73
    %s91 = sphi 0, %s91
    %s93 = sphi 0, %s91
    %s94 = sphi 0, %s93
    %s108 = sphi 0, %s94
    %s112 = sphi 0, %s112
    %s114 = sphi 0, %s112
    %s115 = sphi 0, %s114
    %s129 = sphi 0, %s115
    %s133 = sphi 0, %s133
    %s135 = sphi 0, %s133
    %s136 = sphi 0, %s135
    %s150 = sphi 0, %s136
    %s154 = sphi 0, %s154
    %s156 = sphi 0, %s154
    %s157 = sphi 0, %s156
    %s171 = sphi 0, %s157
    %s177 = sphi 0, %s179
    %s180 = sphi 0, %s177
    %s181 = sphi 0, %s180
    %s197 = sphi 0, %s181
    %s203 = sphi 0, %s205
    %s206 = sphi 0, %s203
    %s207 = sphi 0, %s206
    %s223 = sphi 0, %s207
  $region4: #{tpu_custom_call.1} parent=0 // loop_header_branch
    %18 = sbr.rel (%p16) target = $region8
  $region5: #{tpu_custom_call.1} parent=0 // loop_body
    %s20 = ssub.s32 %s15, 1
    %s21 = ssub.s32 %s15, 2
    %s22 = sadd.s32 %s15, 1
    %s23 = ssub.s32 %s15, %s22
    %p24 = scmp.eq.s32.totalorder %s23, 0
    %s26 = sadd.s32 %s25, 1
    %s27 = scalar_select %p24, %s25, %s26
    %p30 = pneg %p24
    %p31 = scmp.eq.s32.totalorder %s15, 3
    %p32 = por %p30, %p31
    %p33 = scmp.ne.s32.totalorder %s25, %s28
    %p34 = scmp.eq.s32.totalorder %s15, 0
    %p35 = por %p33, %p34
    %p36 = scmp.ne.s32.totalorder %s25, %s28
    %p37 = scmp.eq.s32.totalorder %s20, 3
    %p38 = por %p36, %p37
    %p39 = scmp.ne.s32.totalorder %s28, %s29
    %p40 = scmp.eq.s32.totalorder %s20, 0
    %p41 = por %p39, %p40
    %p42 = scmp.ne.s32.totalorder %s28, %s29
    %p43 = scmp.eq.s32.totalorder %s21, 3
    %p44 = por %p42, %p43
    %p46 = scmp.ne.s32.totalorder %s29, %s45
    %p47 = scmp.eq.s32.totalorder %s21, 0
    %p48 = por %p46, %p47
    %s50 = sadd.s32 %s49, 1
    %p53 = scmp.eq.s32.totalorder %s15, 3
    %p54 = scmp.ne.s32.totalorder %s49, %s51
    %p55 = scmp.eq.s32.totalorder %s15, 0
    %p56 = por %p54, %p55
    %p57 = scmp.ne.s32.totalorder %s49, %s51
    %p58 = scmp.eq.s32.totalorder %s20, 3
    %p59 = por %p57, %p58
    %p60 = scmp.ne.s32.totalorder %s51, %s52
    %p61 = scmp.eq.s32.totalorder %s20, 0
    %p62 = por %p60, %p61
    %p63 = scmp.ne.s32.totalorder %s51, %s52
    %p64 = scmp.eq.s32.totalorder %s21, 3
    %p65 = por %p63, %p64
    %p67 = scmp.ne.s32.totalorder %s52, %s66
    %p68 = scmp.eq.s32.totalorder %s21, 0
    %p69 = por %p67, %p68
    %s71 = sadd.s32 %s70, 1
    %p74 = scmp.eq.s32.totalorder %s15, 3
    %p75 = scmp.ne.s32.totalorder %s70, %s72
    %p76 = scmp.eq.s32.totalorder %s15, 0
    %p77 = por %p75, %p76
    %p78 = scmp.ne.s32.totalorder %s70, %s72
    %p79 = scmp.eq.s32.totalorder %s20, 3
    %p80 = por %p78, %p79
    %p81 = scmp.ne.s32.totalorder %s72, %s73
    %p82 = scmp.eq.s32.totalorder %s20, 0
    %p83 = por %p81, %p82
    %p84 = scmp.ne.s32.totalorder %s72, %s73
    %p85 = scmp.eq.s32.totalorder %s21, 3
    %p86 = por %p84, %p85
    %p88 = scmp.ne.s32.totalorder %s73, %s87
    %p89 = scmp.eq.s32.totalorder %s21, 0
    %p90 = por %p88, %p89
    %s92 = sadd.s32 %s91, 1
    %p95 = scmp.eq.s32.totalorder %s15, 3
    %p96 = scmp.ne.s32.totalorder %s91, %s93
    %p97 = scmp.eq.s32.totalorder %s15, 0
    %p98 = por %p96, %p97
    %p99 = scmp.ne.s32.totalorder %s91, %s93
    %p100 = scmp.eq.s32.totalorder %s20, 3
    %p101 = por %p99, %p100
    %p102 = scmp.ne.s32.totalorder %s93, %s94
    %p103 = scmp.eq.s32.totalorder %s20, 0
    %p104 = por %p102, %p103
    %p105 = scmp.ne.s32.totalorder %s93, %s94
    %p106 = scmp.eq.s32.totalorder %s21, 3
    %p107 = por %p105, %p106
    %p109 = scmp.ne.s32.totalorder %s94, %s108
    %p110 = scmp.eq.s32.totalorder %s21, 0
    %p111 = por %p109, %p110
    %s113 = sadd.s32 %s112, 1
    %p116 = scmp.eq.s32.totalorder %s15, 3
    %p117 = scmp.ne.s32.totalorder %s112, %s114
    %p118 = scmp.eq.s32.totalorder %s15, 0
    %p119 = por %p117, %p118
    %p120 = scmp.ne.s32.totalorder %s112, %s114
    %p121 = scmp.eq.s32.totalorder %s20, 3
    %p122 = por %p120, %p121
    %p123 = scmp.ne.s32.totalorder %s114, %s115
    %p124 = scmp.eq.s32.totalorder %s20, 0
    %p125 = por %p123, %p124
    %p126 = scmp.ne.s32.totalorder %s114, %s115
    %p127 = scmp.eq.s32.totalorder %s21, 3
    %p128 = por %p126, %p127
    %p130 = scmp.ne.s32.totalorder %s115, %s129
    %p131 = scmp.eq.s32.totalorder %s21, 0
    %p132 = por %p130, %p131
    %s134 = sadd.s32 %s133, 1
    %p137 = scmp.eq.s32.totalorder %s15, 3
    %p138 = scmp.ne.s32.totalorder %s133, %s135
    %p139 = scmp.eq.s32.totalorder %s15, 0
    %p140 = por %p138, %p139
    %p141 = scmp.ne.s32.totalorder %s133, %s135
    %p142 = scmp.eq.s32.totalorder %s20, 3
    %p143 = por %p141, %p142
    %p144 = scmp.ne.s32.totalorder %s135, %s136
    %p145 = scmp.eq.s32.totalorder %s20, 0
    %p146 = por %p144, %p145
    %p147 = scmp.ne.s32.totalorder %s135, %s136
    %p148 = scmp.eq.s32.totalorder %s21, 3
    %p149 = por %p147, %p148
    %p151 = scmp.ne.s32.totalorder %s136, %s150
    %p152 = scmp.eq.s32.totalorder %s21, 0
    %p153 = por %p151, %p152
    %s155 = sadd.s32 %s154, 1
    %p158 = scmp.eq.s32.totalorder %s15, 3
    %p159 = scmp.ne.s32.totalorder %s154, %s156
    %p160 = scmp.eq.s32.totalorder %s15, 0
    %p161 = por %p159, %p160
    %p162 = scmp.ne.s32.totalorder %s154, %s156
    %p163 = scmp.eq.s32.totalorder %s20, 3
    %p164 = por %p162, %p163
    %p165 = scmp.ne.s32.totalorder %s156, %s157
    %p166 = scmp.eq.s32.totalorder %s20, 0
    %p167 = por %p165, %p166
    %p168 = scmp.ne.s32.totalorder %s156, %s157
    %p169 = scmp.eq.s32.totalorder %s21, 3
    %p170 = por %p168, %p169
    %p172 = scmp.ne.s32.totalorder %s157, %s171
    %p173 = scmp.eq.s32.totalorder %s21, 0
    %p174 = por %p172, %p173
    %s175 = ssub.s32 %s15, %s22
    %p176 = scmp.eq.s32.totalorder %s175, 0
    %s178 = sadd.s32 %s177, 1
    %s179 = scalar_select %p176, %s177, %s178
    %p182 = pneg %p176
    %p183 = scmp.eq.s32.totalorder %s15, 3
    %p184 = por %p182, %p183
    %p185 = scmp.ne.s32.totalorder %s177, %s180
    %p186 = scmp.eq.s32.totalorder %s15, 0
    %p187 = por %p185, %p186
    %p188 = scmp.ne.s32.totalorder %s177, %s180
    %p189 = scmp.eq.s32.totalorder %s20, 3
    %p190 = por %p188, %p189
    %p191 = scmp.ne.s32.totalorder %s180, %s181
    %p192 = scmp.eq.s32.totalorder %s20, 0
    %p193 = por %p191, %p192
    %p194 = scmp.ne.s32.totalorder %s180, %s181
    %p195 = scmp.eq.s32.totalorder %s21, 3
    %p196 = por %p194, %p195
    %p198 = scmp.ne.s32.totalorder %s181, %s197
    %p199 = scmp.eq.s32.totalorder %s21, 0
    %p200 = por %p198, %p199
    %s201 = ssub.s32 %s15, %s22
    %p202 = scmp.eq.s32.totalorder %s201, 0
    %s204 = sadd.s32 %s203, 1
    %s205 = scalar_select %p202, %s203, %s204
    %p208 = pneg %p202
    %p209 = scmp.eq.s32.totalorder %s15, 3
    %p210 = por %p208, %p209
    %p211 = scmp.ne.s32.totalorder %s203, %s206
    %p212 = scmp.eq.s32.totalorder %s15, 0
    %p213 = por %p211, %p212
    %p214 = scmp.ne.s32.totalorder %s203, %s206
    %p215 = scmp.eq.s32.totalorder %s20, 3
    %p216 = por %p214, %p215
    %p217 = scmp.ne.s32.totalorder %s206, %s207
    %p218 = scmp.eq.s32.totalorder %s20, 0
    %p219 = por %p217, %p218
    %p220 = scmp.ne.s32.totalorder %s206, %s207
    %p221 = scmp.eq.s32.totalorder %s21, 3
    %p222 = por %p220, %p221
    %p224 = scmp.ne.s32.totalorder %s207, %s223
    %p225 = scmp.eq.s32.totalorder %s21, 0
    %p226 = por %p224, %p225
    %p227 = scmp.le.s32.totalorder 1, %s15
    %p228 = scmp.lt.s32.totalorder %s15, 5
    %p229 = pnand %p227, %p228
    %p230 = pneg %p229
    // Predicated region
    $region9: #{tpu_custom_call.1} parent=5 // pred_check
      _
    $region10: #{tpu_custom_call.1} parent=5 // pred_check_branch
      %232 = sbr.rel (%p229) target = $region12
    $region11: #{tpu_custom_call.1} parent=5 // pred_region
      %s233 = ssub.s32 %s15, 1
      // Predicated region
      $region13: #{tpu_custom_call.1} parent=11 // pred_check
        %p234 = pneg %p62
      $region14: #{tpu_custom_call.1} parent=11 // pred_check_branch
        %236 = sbr.rel (%p234) target = $region16
      $region15: #{tpu_custom_call.1} parent=11 // pred_region
        _
      $region16: #{tpu_custom_call.1} parent=11 // pred_fallthru
        _
      // Predicated region
      $region17: #{tpu_custom_call.1} parent=11 // pred_check
        %p237 = pneg %p83
      $region18: #{tpu_custom_call.1} parent=11 // pred_check_branch
        %239 = sbr.rel (%p237) target = $region20
      $region19: #{tpu_custom_call.1} parent=11 // pred_region
        _
      $region20: #{tpu_custom_call.1} parent=11 // pred_fallthru
        _
      // Predicated region
      $region21: #{tpu_custom_call.1} parent=11 // pred_check
        %p240 = pneg %p104
      $region22: #{tpu_custom_call.1} parent=11 // pred_check_branch
        %242 = sbr.rel (%p240) target = $region24
      $region23: #{tpu_custom_call.1} parent=11 // pred_region
        _
      $region24: #{tpu_custom_call.1} parent=11 // pred_fallthru
        _
      // Predicated region
      $region25: #{tpu_custom_call.1} parent=11 // pred_check
        %p243 = pneg %p125
      $region26: #{tpu_custom_call.1} parent=11 // pred_check_branch
        %245 = sbr.rel (%p243) target = $region28
      $region27: #{tpu_custom_call.1} parent=11 // pred_region
        _
      $region28: #{tpu_custom_call.1} parent=11 // pred_fallthru
        _
      // Predicated region
      $region29: #{tpu_custom_call.1} parent=11 // pred_check
        %p246 = pneg %p146
      $region30: #{tpu_custom_call.1} parent=11 // pred_check_branch
        %248 = sbr.rel (%p246) target = $region32
      $region31: #{tpu_custom_call.1} parent=11 // pred_region
        _
      $region32: #{tpu_custom_call.1} parent=11 // pred_fallthru
        _
      // Predicated region
      $region33: #{tpu_custom_call.1} parent=11 // pred_check
        %p249 = pneg %p167
      $region34: #{tpu_custom_call.1} parent=11 // pred_check_branch
        %251 = sbr.rel (%p249) target = $region36
      $region35: #{tpu_custom_call.1} parent=11 // pred_region
        _
      $region36: #{tpu_custom_call.1} parent=11 // pred_fallthru
        _
    $region12: #{tpu_custom_call.1} parent=5 // pred_fallthru
      _
    %p252 = scmp.lt.s32.totalorder %s15, 4
    // Predicated region
    $region37: #{tpu_custom_call.1} parent=5 // pred_check
      %p253 = pneg %p252
    $region38: #{tpu_custom_call.1} parent=5 // pred_check_branch
      %255 = sbr.rel (%p253) target = $region40
    $region39: #{tpu_custom_call.1} parent=5 // pred_region
      // Predicated region
      $region41: #{tpu_custom_call.1} parent=39 // pred_check
        %p256 = pneg %p35
      $region42: #{tpu_custom_call.1} parent=39 // pred_check_branch
        %258 = sbr.rel (%p256) target = $region44
      $region43: #{tpu_custom_call.1} parent=39 // pred_region
        %s259 = smul.u32 8, %s15
        %p260 = scmp.lt.s32.totalorder %s259, 31
        %s261 = scalar_select %p260, %s259, 31
        %s262 = smul.addr %s261, 8
        %s263 = scalar_lea.vmem %s0, %s262
        %s264 = smul.u32 8, %s15
      $region44: #{tpu_custom_call.1} parent=39 // pred_fallthru
        _
    $region40: #{tpu_custom_call.1} parent=5 // pred_fallthru
      _
    %p265 = scmp.le.s32.totalorder 1, %s15
    %p266 = scmp.lt.s32.totalorder %s15, 5
    %p267 = pnand %p265, %p266
    %p268 = pneg %p267
    // Predicated region
    $region45: #{tpu_custom_call.1} parent=5 // pred_check
      _
    $region46: #{tpu_custom_call.1} parent=5 // pred_check_branch
      %270 = sbr.rel (%p267) target = $region48
    $region47: #{tpu_custom_call.1} parent=5 // pred_region
      %s271 = ssub.s32 %s15, 1
      %s272 = smul.u32 8, %s20
      %p273 = scmp.lt.s32.totalorder %s272, 31
      %s274 = scalar_select %p273, %s272, 31
      %s275 = smul.addr %s274, 8
      %s276 = scalar_lea.vmem %s0, %s275
      %p277 = pneg %p41
      %p278 = pneg %p38
      %p279 = pneg %p62
      %p280 = pneg %p59
      %p281 = pneg %p83
      %p282 = pneg %p80
      %p283 = pneg %p104
      %p284 = pneg %p101
      %p285 = pneg %p125
      %p286 = pneg %p122
      %p287 = pneg %p146
      %p288 = pneg %p143
      %p289 = pneg %p167
      %p290 = pneg %p164
      %p291 = pneg %p193
      %p292 = pneg %p190
      %s293 = smul.u32 8, %s20
      %p294 = scmp.lt.s32.totalorder %s293, 31
      %s295 = scalar_select %p294, %s293, 31
      %s296 = smul.addr %s295, 8
      %s297 = scalar_lea.vmem %s7, %s296
      %p298 = pneg %p219
      %p299 = pneg %p216
      %s300 = smul.u32 8, %s20
      %p301 = scmp.lt.s32.totalorder %s300, 31
      %s302 = scalar_select %p301, %s300, 31
      %s303 = smul.addr %s302, 8
      %s304 = scalar_lea.vmem %s8, %s303
      %s305 = smul.u32 8, %s20
      %p306 = scmp.lt.s32.totalorder %s305, 31
      %s307 = scalar_select %p306, %s305, 31
      %s308 = smul.addr %s307, 8
      %s309 = scalar_lea.vmem %s0, %s308
      %s310 = smul.u32 8, %s20
      %s311 = smul.u32 8, %s20
      %p312 = scmp.lt.s32.totalorder %s311, 31
      %s313 = scalar_select %p312, %s311, 31
      %s314 = smul.addr %s313, 8
      %s315 = scalar_lea.vmem %s7, %s314
      %s316 = smul.u32 8, %s20
      %s317 = smul.u32 8, %s20
      %p318 = scmp.lt.s32.totalorder %s317, 31
      %s319 = scalar_select %p318, %s317, 31
      %s320 = smul.addr %s319, 8
      %s321 = scalar_lea.vmem %s8, %s320
      %s322 = smul.u32 8, %s20
      %v323 = vld [vmem:[%s309] sm:$0xff]
      %v324 = vld [vmem:[%s309 + $0x8] sm:$0xff]
      %v325 = vld [vmem:[%s309 + $0x10] sm:$0xff]
      %v326 = vld [vmem:[%s309 + $0x18] sm:$0xff]
      %v327 = vld [vmem:[%s309 + $0x20] sm:$0xff]
      %v328 = vld [vmem:[%s309 + $0x28] sm:$0xff]
      %v329 = vld [vmem:[%s309 + $0x30] sm:$0xff]
      %v330 = vld [vmem:[%s309 + $0x38] sm:$0xff]
      %v331 = vld [vmem:[%s1] sm:$0xff]
      %v332 = vld [vmem:[%s1 + $0x8] sm:$0xff]
      %v333 = vld [vmem:[%s2] sm:$0x1]
      %v335 = vperm.slane %v333, 0
      %vm337 = vcmask 130048
      %v339 = vsel %vm337, %v323, 0
      %v342 = vsel %vm337, %v324, 0
      %v345 = vsel %vm337, %v325, 0
      %v348 = vsel %vm337, %v326, 0
      %v351 = vsel %vm337, %v327, 0
      %v354 = vsel %vm337, %v328, 0
      %v357 = vsel %vm337, %v329, 0
      %v360 = vsel %vm337, %v330, 0
      %362 = vmatpush.msra.mxu0 0.0
      %363 = vmatpush.msra.mxu0 0.0
      %364 = vmatpush.msra.mxu0 0.0
      %365 = vmatpush.msra.mxu0 0.0
      %366 = vmatpush.msra.mxu0 0.0
      %367 = vmatpush.msra.mxu0 0.0
      %368 = vmatpush.msra.mxu0 0.0
      %369 = vmatpush.msra.mxu0 0.0
      %370 = vmatpush.msra.mxu0 0.0
      %371 = vmatpush.msra.mxu0 0.0
      %372 = vmatpush.msra.mxu0 0.0
      %373 = vmatpush.msra.mxu0 0.0
      %374 = vmatpush.msra.mxu0 0.0
      %375 = vmatpush.msra.mxu0 0.0
      %376 = vmatpush.msra.mxu0 %v332
      %377 = vmatpush.msra.mxu0 %v331
      %378 = vmatmul.f32.gmra.mxu0 %v339
      %v379 = vpop.f32.mrf.mxu0
      %v380 = vadd.f32 %v335, %v379
      %381 = vmatmul.f32.gmra.mxu0 %v342
      %v382 = vpop.f32.mrf.mxu0
      %v383 = vadd.f32 %v335, %v382
      %384 = vmatmul.f32.gmra.mxu0 %v345
      %v385 = vpop.f32.mrf.mxu0
      %v386 = vadd.f32 %v335, %v385
      %387 = vmatmul.f32.gmra.mxu0 %v348
      %v388 = vpop.f32.mrf.mxu0
      %v389 = vadd.f32 %v335, %v388
      %390 = vmatmul.f32.gmra.mxu0 %v351
      %v391 = vpop.f32.mrf.mxu0
      %v392 = vadd.f32 %v335, %v391
      %393 = vmatmul.f32.gmra.mxu0 %v354
      %v394 = vpop.f32.mrf.mxu0
      %v395 = vadd.f32 %v335, %v394
      %396 = vmatmul.f32.gmra.mxu0 %v357
      %v397 = vpop.f32.mrf.mxu0
      %v398 = vadd.f32 %v335, %v397
      %399 = vmatmul.f32.gmra.mxu0 %v360
      %v400 = vpop.f32.mrf.mxu0
      %v401 = vadd.f32 %v335, %v400
      %402 = vdwg.mxu0
      %vm403 = vcmp.gt.f32.partialorder %v380, 20.0
      %vm404 = vcmp.gt.f32.partialorder %v383, 20.0
      %vm405 = vcmp.gt.f32.partialorder %v386, 20.0
      %vm406 = vcmp.gt.f32.partialorder %v389, 20.0
      %vm407 = vcmp.gt.f32.partialorder %v392, 20.0
      %vm408 = vcmp.gt.f32.partialorder %v395, 20.0
      %vm409 = vcmp.gt.f32.partialorder %v398, 20.0
      %vm410 = vcmp.gt.f32.partialorder %v401, 20.0
      %v411 = vmin.f32 %v380, 20.0
      %v412 = vmin.f32 %v383, 20.0
      %v413 = vmin.f32 %v386, 20.0
      %v414 = vmin.f32 %v389, 20.0
      %v415 = vmin.f32 %v392, 20.0
      %v416 = vmin.f32 %v395, 20.0
      %v417 = vmin.f32 %v398, 20.0
      %v418 = vmin.f32 %v401, 20.0
      %v419 = vmul.f32 %v411, 1.442695
      %v420 = vpow.pop %v419
      %v421 = vmul.f32 %v412, 1.442695
      %v422 = vpow.pop %v421
      %v423 = vmul.f32 %v413, 1.442695
      %v424 = vpow.pop %v423
      %v425 = vmul.f32 %v414, 1.442695
      %v426 = vpow.pop %v425
      %v427 = vmul.f32 %v415, 1.442695
      %v428 = vpow.pop %v427
      %v429 = vmul.f32 %v416, 1.442695
      %v430 = vpow.pop %v429
      %v431 = vmul.f32 %v417, 1.442695
      %v432 = vpow.pop %v431
      %v433 = vmul.f32 %v418, 1.442695
      %v434 = vpow.pop %v433
      %v435 = vadd.f32 %v420, 1.0
      %v436 = vlog2.pop %v435
      %v437 = vmul.f32 %v436, 0.6931472
      %v438 = vmul.f32 -0.5, %v420
      %v439 = vadd.f32 %v438, 1.0
      %v440 = vmul.f32 %v439, %v420
      %v441 = vand.u32 2147483647, %v420
      %vm442 = vcmp.lt.f32.partialorder %v441, 0.0004427343
      %v443 = vsel %vm442, %v440, %v437
      %v444 = vadd.f32 %v422, 1.0
      %v445 = vlog2.pop %v444
      %v446 = vmul.f32 %v445, 0.6931472
      %v447 = vmul.f32 -0.5, %v422
      %v448 = vadd.f32 %v447, 1.0
      %v449 = vmul.f32 %v448, %v422
      %v450 = vand.u32 2147483647, %v422
      %vm451 = vcmp.lt.f32.partialorder %v450, 0.0004427343
      %v452 = vsel %vm451, %v449, %v446
      %v453 = vadd.f32 %v424, 1.0
      %v454 = vlog2.pop %v453
      %v455 = vmul.f32 %v454, 0.6931472
      %v456 = vmul.f32 -0.5, %v424
      %v457 = vadd.f32 %v456, 1.0
      %v458 = vmul.f32 %v457, %v424
      %v459 = vand.u32 2147483647, %v424
      %vm460 = vcmp.lt.f32.partialorder %v459, 0.0004427343
      %v461 = vsel %vm460, %v458, %v455
      %v462 = vadd.f32 %v426, 1.0
      %v463 = vlog2.pop %v462
      %v464 = vmul.f32 %v463, 0.6931472
      %v465 = vmul.f32 -0.5, %v426
      %v466 = vadd.f32 %v465, 1.0
      %v467 = vmul.f32 %v466, %v426
      %v468 = vand.u32 2147483647, %v426
      %vm469 = vcmp.lt.f32.partialorder %v468, 0.0004427343
      %v470 = vsel %vm469, %v467, %v464
      %v471 = vadd.f32 %v428, 1.0
      %v472 = vlog2.pop %v471
      %v473 = vmul.f32 %v472, 0.6931472
      %v474 = vmul.f32 -0.5, %v428
      %v475 = vadd.f32 %v474, 1.0
      %v476 = vmul.f32 %v475, %v428
      %v477 = vand.u32 2147483647, %v428
      %vm478 = vcmp.lt.f32.partialorder %v477, 0.0004427343
      %v479 = vsel %vm478, %v476, %v473
      %v480 = vadd.f32 %v430, 1.0
      %v481 = vlog2.pop %v480
      %v482 = vmul.f32 %v481, 0.6931472
      %v483 = vmul.f32 -0.5, %v430
      %v484 = vadd.f32 %v483, 1.0
      %v485 = vmul.f32 %v484, %v430
      %v486 = vand.u32 2147483647, %v430
      %vm487 = vcmp.lt.f32.partialorder %v486, 0.0004427343
      %v488 = vsel %vm487, %v485, %v482
      %v489 = vadd.f32 %v432, 1.0
      %v490 = vlog2.pop %v489
      %v491 = vmul.f32 %v490, 0.6931472
      %v492 = vmul.f32 -0.5, %v432
      %v493 = vadd.f32 %v492, 1.0
      %v494 = vmul.f32 %v493, %v432
      %v495 = vand.u32 2147483647, %v432
      %vm496 = vcmp.lt.f32.partialorder %v495, 0.0004427343
      %v497 = vsel %vm496, %v494, %v491
      %v498 = vadd.f32 %v434, 1.0
      %v499 = vlog2.pop %v498
      %v500 = vmul.f32 %v499, 0.6931472
      %v501 = vmul.f32 -0.5, %v434
      %v502 = vadd.f32 %v501, 1.0
      %v503 = vmul.f32 %v502, %v434
      %v504 = vand.u32 2147483647, %v434
      %vm505 = vcmp.lt.f32.partialorder %v504, 0.0004427343
      %v506 = vsel %vm505, %v503, %v500
      %v507 = vsel %vm403, %v380, %v443
      %v508 = vsel %vm404, %v383, %v452
      %v509 = vsel %vm405, %v386, %v461
      %v510 = vsel %vm406, %v389, %v470
      %v511 = vsel %vm407, %v392, %v479
      %v512 = vsel %vm408, %v395, %v488
      %v513 = vsel %vm409, %v398, %v497
      %v514 = vsel %vm410, %v401, %v506
      %v515 = vld [vmem:[%s3] sm:$0xff]
      %v516 = vld [vmem:[%s3 + $0x8] sm:$0xff]
      %v517 = vld [vmem:[%s3 + $0x10] sm:$0xff]
      %v518 = vld [vmem:[%s3 + $0x18] sm:$0xff]
      %v519 = vld [vmem:[%s4] sm:$0x1]
      %v521 = vperm.slane %v519, 0
      %vm523 = vcmask 261120
      %v525 = vsel %vm523, %v507, 0
      %v528 = vsel %vm523, %v508, 0
      %v531 = vsel %vm523, %v509, 0
      %v534 = vsel %vm523, %v510, 0
      %v537 = vsel %vm523, %v511, 0
      %v540 = vsel %vm523, %v512, 0
      %v543 = vsel %vm523, %v513, 0
      %v546 = vsel %vm523, %v514, 0
      %548 = vmatpush.msra.mxu0 0.0
      %549 = vmatpush.msra.mxu0 0.0
      %550 = vmatpush.msra.mxu0 0.0
      %551 = vmatpush.msra.mxu0 0.0
      %552 = vmatpush.msra.mxu0 0.0
      %553 = vmatpush.msra.mxu0 0.0
      %554 = vmatpush.msra.mxu0 0.0
      %555 = vmatpush.msra.mxu0 0.0
      %556 = vmatpush.msra.mxu0 0.0
      %557 = vmatpush.msra.mxu0 0.0
      %558 = vmatpush.msra.mxu0 0.0
      %559 = vmatpush.msra.mxu0 0.0
      %560 = vmatpush.msra.mxu0 %v518
      %561 = vmatpush.msra.mxu0 %v517
      %562 = vmatpush.msra.mxu0 %v516
      %563 = vmatpush.msra.mxu0 %v515
      %564 = vmatmul.f32.gmra.mxu0 %v525
      %v565 = vpop.f32.mrf.mxu0
      %v566 = vadd.f32 %v521, %v565
      %567 = vmatmul.f32.gmra.mxu0 %v528
      %v568 = vpop.f32.mrf.mxu0
      %v569 = vadd.f32 %v521, %v568
      %570 = vmatmul.f32.gmra.mxu0 %v531
      %v571 = vpop.f32.mrf.mxu0
      %v572 = vadd.f32 %v521, %v571
      %573 = vmatmul.f32.gmra.mxu0 %v534
      %v574 = vpop.f32.mrf.mxu0
      %v575 = vadd.f32 %v521, %v574
      %576 = vmatmul.f32.gmra.mxu0 %v537
      %v577 = vpop.f32.mrf.mxu0
      %v578 = vadd.f32 %v521, %v577
      %579 = vmatmul.f32.gmra.mxu0 %v540
      %v580 = vpop.f32.mrf.mxu0
      %v581 = vadd.f32 %v521, %v580
      %582 = vmatmul.f32.gmra.mxu0 %v543
      %v583 = vpop.f32.mrf.mxu0
      %v584 = vadd.f32 %v521, %v583
      %585 = vmatmul.f32.gmra.mxu0 %v546
      %v586 = vpop.f32.mrf.mxu0
      %v587 = vadd.f32 %v521, %v586
      %588 = vdwg.mxu0
      %vm589 = vcmask 31744
      %590 = vst.msk [vmem:[%s315] sm:$0xff] %vm589, %v566
      %591 = vst.msk [vmem:[%s315 + $0x8] sm:$0xff] %vm589, %v569
      %592 = vst.msk [vmem:[%s315 + $0x10] sm:$0xff] %vm589, %v572
      %593 = vst.msk [vmem:[%s315 + $0x18] sm:$0xff] %vm589, %v575
      %594 = vst.msk [vmem:[%s315 + $0x20] sm:$0xff] %vm589, %v578
      %595 = vst.msk [vmem:[%s315 + $0x28] sm:$0xff] %vm589, %v581
      %596 = vst.msk [vmem:[%s315 + $0x30] sm:$0xff] %vm589, %v584
      %597 = vst.msk [vmem:[%s315 + $0x38] sm:$0xff] %vm589, %v587
      %v598 = vld [vmem:[%s5] sm:$0xff]
      %v599 = vld [vmem:[%s5 + $0x8] sm:$0xff]
      %v600 = vld [vmem:[%s5 + $0x10] sm:$0xff]
      %v601 = vld [vmem:[%s5 + $0x18] sm:$0xff]
      %v602 = vld [vmem:[%s6] sm:$0x1]
      %v604 = vperm.slane %v602, 0
      %606 = vmatpush.msra.mxu0 0.0
      %607 = vmatpush.msra.mxu0 0.0
      %608 = vmatpush.msra.mxu0 0.0
      %609 = vmatpush.msra.mxu0 0.0
      %610 = vmatpush.msra.mxu0 0.0
      %611 = vmatpush.msra.mxu0 0.0
      %612 = vmatpush.msra.mxu0 0.0
      %613 = vmatpush.msra.mxu0 0.0
      %614 = vmatpush.msra.mxu0 0.0
      %615 = vmatpush.msra.mxu0 0.0
      %616 = vmatpush.msra.mxu0 0.0
      %617 = vmatpush.msra.mxu0 0.0
      %618 = vmatpush.msra.mxu0 %v601
      %619 = vmatpush.msra.mxu0 %v600
      %620 = vmatpush.msra.mxu0 %v599
      %621 = vmatpush.msra.mxu0 %v598
      %622 = vmatmul.f32.gmra.mxu0 %v525
      %v623 = vpop.f32.mrf.mxu0
      %v624 = vadd.f32 %v604, %v623
      %625 = vmatmul.f32.gmra.mxu0 %v528
      %v626 = vpop.f32.mrf.mxu0
      %v627 = vadd.f32 %v604, %v626
      %628 = vmatmul.f32.gmra.mxu0 %v531
      %v629 = vpop.f32.mrf.mxu0
      %v630 = vadd.f32 %v604, %v629
      %631 = vmatmul.f32.gmra.mxu0 %v534
      %v632 = vpop.f32.mrf.mxu0
      %v633 = vadd.f32 %v604, %v632
      %634 = vmatmul.f32.gmra.mxu0 %v537
      %v635 = vpop.f32.mrf.mxu0
      %v636 = vadd.f32 %v604, %v635
      %637 = vmatmul.f32.gmra.mxu0 %v540
      %v638 = vpop.f32.mrf.mxu0
      %v639 = vadd.f32 %v604, %v638
      %640 = vmatmul.f32.gmra.mxu0 %v543
      %v641 = vpop.f32.mrf.mxu0
      %v642 = vadd.f32 %v604, %v641
      %643 = vmatmul.f32.gmra.mxu0 %v546
      %v644 = vpop.f32.mrf.mxu0
      %v645 = vadd.f32 %v604, %v644
      %646 = vdwg.mxu0
      %647 = vst.msk [vmem:[%s321] sm:$0xff] %vm337, %v624
      %648 = vst.msk [vmem:[%s321 + $0x8] sm:$0xff] %vm337, %v627
      %649 = vst.msk [vmem:[%s321 + $0x10] sm:$0xff] %vm337, %v630
      %650 = vst.msk [vmem:[%s321 + $0x18] sm:$0xff] %vm337, %v633
      %651 = vst.msk [vmem:[%s321 + $0x20] sm:$0xff] %vm337, %v636
      %652 = vst.msk [vmem:[%s321 + $0x28] sm:$0xff] %vm337, %v639
      %653 = vst.msk [vmem:[%s321 + $0x30] sm:$0xff] %vm337, %v642
      %654 = vst.msk [vmem:[%s321 + $0x38] sm:$0xff] %vm337, %v645
      %s655 = smul.u32 8, %s20
      %p656 = scmp.lt.s32.totalorder %s655, 31
      %s657 = scalar_select %p656, %s655, 31
      %s658 = smul.addr %s657, 8
      %s659 = scalar_lea.vmem %s7, %s658
      %s660 = smul.u32 8, %s20
      %p661 = scmp.lt.s32.totalorder %s660, 31
      %s662 = scalar_select %p661, %s660, 31
      %s663 = smul.addr %s662, 8
      %s664 = scalar_lea.vmem %s8, %s663
      // Predicated region
      $region49: #{tpu_custom_call.1} parent=47 // pred_check
        %p665 = pneg %p190
      $region50: #{tpu_custom_call.1} parent=47 // pred_check_branch
        %667 = sbr.rel (%p665) target = $region52
      $region51: #{tpu_custom_call.1} parent=47 // pred_region
        %s668 = smul.u32 8, %s20
      $region52: #{tpu_custom_call.1} parent=47 // pred_fallthru
        _
      // Predicated region
      $region53: #{tpu_custom_call.1} parent=47 // pred_check
        %p669 = pneg %p216
      $region54: #{tpu_custom_call.1} parent=47 // pred_check_branch
        %671 = sbr.rel (%p669) target = $region56
      $region55: #{tpu_custom_call.1} parent=47 // pred_region
        %s672 = smul.u32 8, %s20
      $region56: #{tpu_custom_call.1} parent=47 // pred_fallthru
        _
    $region48: #{tpu_custom_call.1} parent=5 // pred_fallthru
      _
    %p673 = scmp.le.s32.totalorder 2, %s15
    // Predicated region
    $region57: #{tpu_custom_call.1} parent=5 // pred_check
      %p674 = pneg %p673
    $region58: #{tpu_custom_call.1} parent=5 // pred_check_branch
      %676 = sbr.rel (%p674) target = $region60
    $region59: #{tpu_custom_call.1} parent=5 // pred_region
      %s677 = ssub.s32 %s15, 2
      // Predicated region
      $region61: #{tpu_custom_call.1} parent=59 // pred_check
        %p678 = pneg %p196
      $region62: #{tpu_custom_call.1} parent=59 // pred_check_branch
        %680 = sbr.rel (%p678) target = $region64
      $region63: #{tpu_custom_call.1} parent=59 // pred_region
        %s681 = smul.u32 8, %s21
        %p682 = scmp.lt.s32.totalorder %s681, 31
        %s683 = scalar_select %p682, %s681, 31
        %s684 = smul.addr %s683, 8
        %s685 = scalar_lea.vmem %s7, %s684
      $region64: #{tpu_custom_call.1} parent=59 // pred_fallthru
        _
      // Predicated region
      $region65: #{tpu_custom_call.1} parent=59 // pred_check
        %p686 = pneg %p222
      $region66: #{tpu_custom_call.1} parent=59 // pred_check_branch
        %688 = sbr.rel (%p686) target = $region68
      $region67: #{tpu_custom_call.1} parent=59 // pred_region
        %s689 = smul.u32 8, %s21
        %p690 = scmp.lt.s32.totalorder %s689, 31
        %s691 = scalar_select %p690, %s689, 31
        %s692 = smul.addr %s691, 8
        %s693 = scalar_lea.vmem %s8, %s692
      $region68: #{tpu_custom_call.1} parent=59 // pred_fallthru
        _
    $region60: #{tpu_custom_call.1} parent=5 // pred_fallthru
      _
  $region6: #{tpu_custom_call.1} parent=0 // loop_footer
    %s19 = sadd.s32 1, %s15
  $region7: #{tpu_custom_call.1} parent=0 // loop_footer_branch
    %14 = sbr.rel target = $region3
  $region8: #{tpu_custom_call.1} parent=0 // loop_exit
    _

</llo_original>
